<compile_context>
chip_gen: v7x
topology: tpu7x:2x2x1
jax: 0.10.0
libtpu: 0.0.40
codegen_flags: <defaults>
</compile_context>

<pallas_src>
import jax
import jax.numpy as jnp
from jax.experimental import pallas as pl
from jax.experimental.pallas import tpu as pltpu


def conv2d_pallas(x, w, b):
    """Conv2d(C -> CO, KHxKW, stride=1, pad=0).

    x: (N, C, H, W) f32, w: (CO, C, KH, KW) f32, b: (CO,) f32 -> (N, CO, OH, OW).
    """
    N, C, H, W = x.shape
    CO, CI, KH, KW = w.shape
    assert CI == C
    OH, OW = H - KH + 1, W - KW + 1  # stride=1, padding=0
    HW = H * W
    K = C * KH * KW

    # ---- wrapper-side layout plumbing (plain JAX, no compute) ----
    # Lane-dense input: (N, C, H*W).
    x_flat = x.reshape(N, C, HW)
    # Fused weight matrix, row order = tap-major / channel-minor, matching the
    # im2col rows built inside the kernel: w_mat[co, (kh*KW+kw)*C + ci].
    w_mat = jnp.transpose(w, (0, 2, 3, 1)).reshape(CO, K)   # (CO, KH*KW*C)
    b2d = b.reshape(CO, 1)

    def conv_kernel(x_ref, w_ref, b_ref, o_ref, cols_ref):
        xb = x_ref[0]                                        # (C, H*W), 256 lanes
        # Doubled buffer so a "left roll by s" is a static lane slice [s : s+HW).
        # The concat point (offset HW=256) is 128-aligned -> cheap.
        xb2 = jnp.concatenate([xb, xb], axis=1)              # (C, 2*HW)
        # Build the im2col matrix (K, H*W) once. Each tap (kh, kw) is the input
        # shifted left by kh*W + kw along lanes, stored at a static sublane
        # offset in VMEM scratch.  Wrapped-around values only land in output
        # columns that are cropped away in the wrapper (oh >= OH or ow >= OW).
        for idx in range(KH * KW):
            kh, kw = idx // KW, idx % KW
            s = kh * W + kw
            cols_ref[idx * C:(idx + 1) * C, :] = xb2[:, s:s + HW]
        # Single fused MXU matmul: (CO, K) @ (K, H*W) -> (CO, H*W), lane-dense.
        acc = jnp.dot(w_ref[...], cols_ref[...],
                      preferred_element_type=jnp.float32)
        o_ref[0] = (acc + b_ref[...]).astype(o_ref.dtype)    # bias broadcast (CO,1)

    out_flat = pl.pallas_call(
        conv_kernel,
        out_shape=jax.ShapeDtypeStruct((N, CO, HW), x.dtype),
        grid=(N,),
        in_specs=[
            pl.BlockSpec((1, C, HW), lambda n: (n, 0, 0)),
            pl.BlockSpec((CO, K), lambda n: (0, 0)),
            pl.BlockSpec((CO, 1), lambda n: (0, 0)),
        ],
        out_specs=pl.BlockSpec((1, CO, HW), lambda n: (n, 0, 0)),
        scratch_shapes=[pltpu.VMEM((K, HW), jnp.float32)],
        compiler_params=pltpu.CompilerParams(
            dimension_semantics=("parallel",)),
    )(x_flat, w_mat, b2d)

    # Crop the padded lane space back to the valid conv window (layout plumbing).
    return out_flat.reshape(N, CO, H, W)[:, :, :OH, :OW]


if __name__ == "__main__":
    key = jax.random.PRNGKey(0)
    kx, kw, kb = jax.random.split(key, 3)

    N, C, H, W = 2, 3, 16, 16          # Conv2d(3, 6, 3, 1, 0) -> output (2, 6, 14, 14)
    CO, KH, KW = 6, 3, 3

    x = jax.random.normal(kx, (N, C, H, W), dtype=jnp.float32)
    # Deterministic synthetic parameters (PyTorch-like uniform scale 1/sqrt(fan_in)).
    fan_in = C * KH * KW
    bound = 1.0 / (fan_in ** 0.5)
    w = jax.random.uniform(kw, (CO, C, KH, KW), jnp.float32, -bound, bound)
    b = jax.random.uniform(kb, (CO,), jnp.float32, -bound, bound)

    out = conv2d_pallas(x, w, b)
    out = jax.block_until_ready(out)

    # Sanity check against XLA's conv (not part of the kernel).
    ref = jax.lax.conv_general_dilated(
        x, w, window_strides=(1, 1), padding="VALID",
        dimension_numbers=("NCHW", "OIHW", "NCHW")) + b.reshape(1, CO, 1, 1)
    assert out.shape == (N, CO, H - KH + 1, W - KW + 1)
    assert jnp.allclose(out, ref, atol=1e-4, rtol=1e-4)

    print("KERNEL_OK")
</pallas_src>

<mosaic_0001>
module attributes {stable_mosaic.version = 11 : i64} {
  func.func @conv_kernel(%arg0: i32, %arg1: memref<1x3x256xf32, #tpu.memory_space<vmem>>, %arg2: memref<6x27xf32, #tpu.memory_space<vmem>>, %arg3: memref<6x1xf32, #tpu.memory_space<vmem>>, %arg4: memref<1x6x256xf32, #tpu.memory_space<vmem>>, %arg5: memref<27x256xf32, #tpu.memory_space<vmem>>) attributes {dimension_semantics = [#tpu.dimension_semantics<parallel>], iteration_bounds = array<i64: 2>, scalar_prefetch = 0 : i64, scratch_operands = 1 : i64, tpu.core_type = #tpu.core_type<tc>, window_params = [{transform_indices = @transform_0, window_bounds = array<i64: 1, 3, 256>}, {pipeline_mode = #tpu.pipeline_mode<synchronous>, transform_indices = @transform_1, window_bounds = array<i64: 6, 27>}, {pipeline_mode = #tpu.pipeline_mode<synchronous>, transform_indices = @transform_2, window_bounds = array<i64: 6, 1>}, {transform_indices = @transform_3, window_bounds = array<i64: 1, 6, 256>}]} {
    %c0 = arith.constant 0 : index
    %c0_0 = arith.constant 0 : index
    %c0_1 = arith.constant 0 : index
    %0 = vector.load %arg1[%c0, %c0_0, %c0_1] : memref<1x3x256xf32, #tpu.memory_space<vmem>>, vector<1x3x256xf32>
    %1 = vector.shape_cast %0 : vector<1x3x256xf32> to vector<3x256xf32>
    %2 = tpu.concatenate %1, %1 in 1 : vector<3x256xf32>, vector<3x256xf32> -> vector<3x512xf32>
    %3 = vector.extract_strided_slice %2 {offsets = [0, 0], sizes = [3, 256], strides = [1, 1]} : vector<3x512xf32> to vector<3x256xf32>
    %c0_2 = arith.constant 0 : index
    %c0_3 = arith.constant 0 : index
    %4 = vector.load %arg5[%c0_2, %c0_3] : memref<27x256xf32, #tpu.memory_space<vmem>>, vector<3x256xf32>
    tpu.vector_store %arg5[%c0_2, %c0_3], %3 {strides = array<i32>} : memref<27x256xf32, #tpu.memory_space<vmem>>, vector<3x256xf32>,
    %5 = vector.extract_strided_slice %2 {offsets = [0, 1], sizes = [3, 256], strides = [1, 1]} : vector<3x512xf32> to vector<3x256xf32>
    %c3 = arith.constant 3 : index
    %c0_4 = arith.constant 0 : index
    %6 = vector.load %arg5[%c3, %c0_4] : memref<27x256xf32, #tpu.memory_space<vmem>>, vector<3x256xf32>
    tpu.vector_store %arg5[%c3, %c0_4], %5 {strides = array<i32>} : memref<27x256xf32, #tpu.memory_space<vmem>>, vector<3x256xf32>,
    %7 = vector.extract_strided_slice %2 {offsets = [0, 2], sizes = [3, 256], strides = [1, 1]} : vector<3x512xf32> to vector<3x256xf32>
    %c6 = arith.constant 6 : index
    %c0_5 = arith.constant 0 : index
    %8 = vector.load %arg5[%c6, %c0_5] : memref<27x256xf32, #tpu.memory_space<vmem>>, vector<3x256xf32>
    tpu.vector_store %arg5[%c6, %c0_5], %7 {strides = array<i32>} : memref<27x256xf32, #tpu.memory_space<vmem>>, vector<3x256xf32>,
    %9 = vector.extract_strided_slice %2 {offsets = [0, 16], sizes = [3, 256], strides = [1, 1]} : vector<3x512xf32> to vector<3x256xf32>
    %c9 = arith.constant 9 : index
    %c0_6 = arith.constant 0 : index
    %10 = vector.load %arg5[%c9, %c0_6] : memref<27x256xf32, #tpu.memory_space<vmem>>, vector<3x256xf32>
    tpu.vector_store %arg5[%c9, %c0_6], %9 {strides = array<i32>} : memref<27x256xf32, #tpu.memory_space<vmem>>, vector<3x256xf32>,
    %11 = vector.extract_strided_slice %2 {offsets = [0, 17], sizes = [3, 256], strides = [1, 1]} : vector<3x512xf32> to vector<3x256xf32>
    %c12 = arith.constant 12 : index
    %c0_7 = arith.constant 0 : index
    %12 = vector.load %arg5[%c12, %c0_7] : memref<27x256xf32, #tpu.memory_space<vmem>>, vector<3x256xf32>
    tpu.vector_store %arg5[%c12, %c0_7], %11 {strides = array<i32>} : memref<27x256xf32, #tpu.memory_space<vmem>>, vector<3x256xf32>,
    %13 = vector.extract_strided_slice %2 {offsets = [0, 18], sizes = [3, 256], strides = [1, 1]} : vector<3x512xf32> to vector<3x256xf32>
    %c15 = arith.constant 15 : index
    %c0_8 = arith.constant 0 : index
    %14 = vector.load %arg5[%c15, %c0_8] : memref<27x256xf32, #tpu.memory_space<vmem>>, vector<3x256xf32>
    tpu.vector_store %arg5[%c15, %c0_8], %13 {strides = array<i32>} : memref<27x256xf32, #tpu.memory_space<vmem>>, vector<3x256xf32>,
    %15 = vector.extract_strided_slice %2 {offsets = [0, 32], sizes = [3, 256], strides = [1, 1]} : vector<3x512xf32> to vector<3x256xf32>
    %c18 = arith.constant 18 : index
    %c0_9 = arith.constant 0 : index
    %16 = vector.load %arg5[%c18, %c0_9] : memref<27x256xf32, #tpu.memory_space<vmem>>, vector<3x256xf32>
    tpu.vector_store %arg5[%c18, %c0_9], %15 {strides = array<i32>} : memref<27x256xf32, #tpu.memory_space<vmem>>, vector<3x256xf32>,
    %17 = vector.extract_strided_slice %2 {offsets = [0, 33], sizes = [3, 256], strides = [1, 1]} : vector<3x512xf32> to vector<3x256xf32>
    %c21 = arith.constant 21 : index
    %c0_10 = arith.constant 0 : index
    %18 = vector.load %arg5[%c21, %c0_10] : memref<27x256xf32, #tpu.memory_space<vmem>>, vector<3x256xf32>
    tpu.vector_store %arg5[%c21, %c0_10], %17 {strides = array<i32>} : memref<27x256xf32, #tpu.memory_space<vmem>>, vector<3x256xf32>,
    %19 = vector.extract_strided_slice %2 {offsets = [0, 34], sizes = [3, 256], strides = [1, 1]} : vector<3x512xf32> to vector<3x256xf32>
    %c24 = arith.constant 24 : index
    %c0_11 = arith.constant 0 : index
    %20 = vector.load %arg5[%c24, %c0_11] : memref<27x256xf32, #tpu.memory_space<vmem>>, vector<3x256xf32>
    tpu.vector_store %arg5[%c24, %c0_11], %19 {strides = array<i32>} : memref<27x256xf32, #tpu.memory_space<vmem>>, vector<3x256xf32>,
    %c0_12 = arith.constant 0 : index
    %c0_13 = arith.constant 0 : index
    %21 = vector.load %arg2[%c0_12, %c0_13] : memref<6x27xf32, #tpu.memory_space<vmem>>, vector<6x27xf32>
    %c0_14 = arith.constant 0 : index
    %c0_15 = arith.constant 0 : index
    %22 = vector.load %arg5[%c0_14, %c0_15] : memref<27x256xf32, #tpu.memory_space<vmem>>, vector<27x256xf32>
    %cst = arith.constant dense<0.000000e+00> : vector<6x256xf32>
    %23 = tpu.matmul %21, %22, %cst {dimension_numbers = #tpu.dot_dimension_numbers<[1], [0], [0], [1], [0, 0, 1, 1], [], []>} : vector<6x27xf32>, vector<27x256xf32>, vector<6x256xf32> -> vector<6x256xf32>
    %c0_16 = arith.constant 0 : index
    %c0_17 = arith.constant 0 : index
    %24 = vector.load %arg3[%c0_16, %c0_17] : memref<6x1xf32, #tpu.memory_space<vmem>>, vector<6x1xf32>
    %25 = vector.broadcast %24 : vector<6x1xf32> to vector<6x256xf32>
    %26 = arith.addf %23, %25 : vector<6x256xf32>
    %c0_18 = arith.constant 0 : index
    %c0_19 = arith.constant 0 : index
    %c0_20 = arith.constant 0 : index
    %27 = vector.load %arg4[%c0_18, %c0_19, %c0_20] : memref<1x6x256xf32, #tpu.memory_space<vmem>>, vector<1x6x256xf32>
    %28 = vector.shape_cast %27 : vector<1x6x256xf32> to vector<6x256xf32>
    %29 = vector.shape_cast %26 : vector<6x256xf32> to vector<1x6x256xf32>
    tpu.vector_store %arg4[%c0_18, %c0_19, %c0_20], %29 {strides = array<i32>} : memref<1x6x256xf32, #tpu.memory_space<vmem>>, vector<1x6x256xf32>,
    return
  }
  func.func @transform_0(%arg0: i32) -> (i32, i32, i32) {
    %c0_i32 = arith.constant 0 : i32
    %c0_i32_0 = arith.constant 0 : i32
    %c0_i32_1 = arith.constant 0 : i32
    return %arg0, %c0_i32, %c0_i32_0 : i32, i32, i32
  }
  func.func @transform_1(%arg0: i32) -> (i32, i32) {
    %c0_i32 = arith.constant 0 : i32
    %c0_i32_0 = arith.constant 0 : i32
    %c0_i32_1 = arith.constant 0 : i32
    return %c0_i32, %c0_i32_0 : i32, i32
  }
  func.func @transform_2(%arg0: i32) -> (i32, i32) {
    %c0_i32 = arith.constant 0 : i32
    %c0_i32_0 = arith.constant 0 : i32
    %c0_i32_1 = arith.constant 0 : i32
    return %c0_i32, %c0_i32_0 : i32, i32
  }
  func.func @transform_3(%arg0: i32) -> (i32, i32, i32) {
    %c0_i32 = arith.constant 0 : i32
    %c0_i32_0 = arith.constant 0 : i32
    %c0_i32_1 = arith.constant 0 : i32
    return %arg0, %c0_i32, %c0_i32_0 : i32, i32, i32
  }
}

</mosaic_0001>

<llo_original>
// kernel: tpu_custom_call.1
$region0: #{tpu_custom_call.1}
  #allocation0 [shape = 'u32[]', space=smem, size = 0x4, offset = 0x4, fixed_abs, tag = 'smem constant byte address 0x4 - core index']
  #allocation1 [shape = 'u32[144,128]{1,0:T(1,128)}', space=vmem, size = 0x12000, scoped, tag = 'internal scratch']
  #allocation2 [shape = 'f32[27,256]{1,0:T(8,128)}', space=vmem, size = 0x8000, scoped, tag = 'scratch operand']
  %s0 = inlined_call_operand.vmem [shape: f32[2,3,256], index: 0, kind: input, shape index: {}]
  %s1 = inlined_call_operand.vmem [shape: f32[6,27], index: 1, kind: input, shape index: {}]
  %s2 = inlined_call_operand.vmem [shape: f32[6,1], index: 2, kind: input, shape index: {}]
  %s3 = inlined_call_operand.vmem [shape: f32[2,6,256], index: 3, kind: output, shape index: {}]
  %s4 = sld [smem:[#allocation0]]
  $region45: #{tpu_custom_call.1} parent=0
    _
  %s6 = ssub.s32 1, %s4
  %s7 = scalar_select 0, %s6, %s4
  loop: start=0, step=1, limit=4
  $region2: #{tpu_custom_call.1} parent=0 // loop_pre_header
    _
  $region3: #{tpu_custom_call.1} parent=0 // loop_header
    %s9 = sphi 0, %s13
    %p10 = scmp.ge.s32.totalorder %s9, 4
    %s19 = sphi 0, %s21
    %s22 = sphi 0, %s19
    %s23 = sphi 0, %s22
    %s39 = sphi 0, %s23
    %s43 = sphi 0, %s43
    %s45 = sphi 0, %s43
    %s46 = sphi 0, %s45
    %s60 = sphi 0, %s46
    %s64 = sphi 0, %s64
    %s66 = sphi 0, %s64
    %s67 = sphi 0, %s66
    %s81 = sphi 0, %s67
    %s87 = sphi 0, %s89
    %s90 = sphi 0, %s87
    %s91 = sphi 0, %s90
    %s107 = sphi 0, %s91
  $region4: #{tpu_custom_call.1} parent=0 // loop_header_branch
    %12 = sbr.rel (%p10) target = $region8
  $region5: #{tpu_custom_call.1} parent=0 // loop_body
    %s14 = ssub.s32 %s9, 1
    %s15 = ssub.s32 %s9, 2
    %s16 = sadd.s32 %s9, 1
    %s17 = ssub.s32 %s9, %s16
    %p18 = scmp.eq.s32.totalorder %s17, 0
    %s20 = sadd.s32 %s19, 1
    %s21 = scalar_select %p18, %s19, %s20
    %p24 = pneg %p18
    %p25 = scmp.eq.s32.totalorder %s9, 1
    %p26 = por %p24, %p25
    %p27 = scmp.ne.s32.totalorder %s19, %s22
    %p28 = scmp.eq.s32.totalorder %s9, 0
    %p29 = por %p27, %p28
    %p30 = scmp.ne.s32.totalorder %s19, %s22
    %p31 = scmp.eq.s32.totalorder %s14, 1
    %p32 = por %p30, %p31
    %p33 = scmp.ne.s32.totalorder %s22, %s23
    %p34 = scmp.eq.s32.totalorder %s14, 0
    %p35 = por %p33, %p34
    %p36 = scmp.ne.s32.totalorder %s22, %s23
    %p37 = scmp.eq.s32.totalorder %s15, 1
    %p38 = por %p36, %p37
    %p40 = scmp.ne.s32.totalorder %s23, %s39
    %p41 = scmp.eq.s32.totalorder %s15, 0
    %p42 = por %p40, %p41
    %s44 = sadd.s32 %s43, 1
    %p47 = scmp.eq.s32.totalorder %s9, 1
    %p48 = scmp.ne.s32.totalorder %s43, %s45
    %p49 = scmp.eq.s32.totalorder %s9, 0
    %p50 = por %p48, %p49
    %p51 = scmp.ne.s32.totalorder %s43, %s45
    %p52 = scmp.eq.s32.totalorder %s14, 1
    %p53 = por %p51, %p52
    %p54 = scmp.ne.s32.totalorder %s45, %s46
    %p55 = scmp.eq.s32.totalorder %s14, 0
    %p56 = por %p54, %p55
    %p57 = scmp.ne.s32.totalorder %s45, %s46
    %p58 = scmp.eq.s32.totalorder %s15, 1
    %p59 = por %p57, %p58
    %p61 = scmp.ne.s32.totalorder %s46, %s60
    %p62 = scmp.eq.s32.totalorder %s15, 0
    %p63 = por %p61, %p62
    %s65 = sadd.s32 %s64, 1
    %p68 = scmp.eq.s32.totalorder %s9, 1
    %p69 = scmp.ne.s32.totalorder %s64, %s66
    %p70 = scmp.eq.s32.totalorder %s9, 0
    %p71 = por %p69, %p70
    %p72 = scmp.ne.s32.totalorder %s64, %s66
    %p73 = scmp.eq.s32.totalorder %s14, 1
    %p74 = por %p72, %p73
    %p75 = scmp.ne.s32.totalorder %s66, %s67
    %p76 = scmp.eq.s32.totalorder %s14, 0
    %p77 = por %p75, %p76
    %p78 = scmp.ne.s32.totalorder %s66, %s67
    %p79 = scmp.eq.s32.totalorder %s15, 1
    %p80 = por %p78, %p79
    %p82 = scmp.ne.s32.totalorder %s67, %s81
    %p83 = scmp.eq.s32.totalorder %s15, 0
    %p84 = por %p82, %p83
    %s85 = ssub.s32 %s9, %s16
    %p86 = scmp.eq.s32.totalorder %s85, 0
    %s88 = sadd.s32 %s87, 1
    %s89 = scalar_select %p86, %s87, %s88
    %p92 = pneg %p86
    %p93 = scmp.eq.s32.totalorder %s9, 1
    %p94 = por %p92, %p93
    %p95 = scmp.ne.s32.totalorder %s87, %s90
    %p96 = scmp.eq.s32.totalorder %s9, 0
    %p97 = por %p95, %p96
    %p98 = scmp.ne.s32.totalorder %s87, %s90
    %p99 = scmp.eq.s32.totalorder %s14, 1
    %p100 = por %p98, %p99
    %p101 = scmp.ne.s32.totalorder %s90, %s91
    %p102 = scmp.eq.s32.totalorder %s14, 0
    %p103 = por %p101, %p102
    %p104 = scmp.ne.s32.totalorder %s90, %s91
    %p105 = scmp.eq.s32.totalorder %s15, 1
    %p106 = por %p104, %p105
    %p108 = scmp.ne.s32.totalorder %s91, %s107
    %p109 = scmp.eq.s32.totalorder %s15, 0
    %p110 = por %p108, %p109
    %p111 = scmp.le.s32.totalorder 1, %s9
    %p112 = scmp.lt.s32.totalorder %s9, 3
    %p113 = pnand %p111, %p112
    %p114 = pneg %p113
    // Predicated region
    $region9: #{tpu_custom_call.1} parent=5 // pred_check
      _
    $region10: #{tpu_custom_call.1} parent=5 // pred_check_branch
      %116 = sbr.rel (%p113) target = $region12
    $region11: #{tpu_custom_call.1} parent=5 // pred_region
      %s117 = ssub.s32 %s9, 1
      // Predicated region
      $region13: #{tpu_custom_call.1} parent=11 // pred_check
        %p118 = pneg %p56
      $region14: #{tpu_custom_call.1} parent=11 // pred_check_branch
        %120 = sbr.rel (%p118) target = $region16
      $region15: #{tpu_custom_call.1} parent=11 // pred_region
        _
      $region16: #{tpu_custom_call.1} parent=11 // pred_fallthru
        _
      // Predicated region
      $region17: #{tpu_custom_call.1} parent=11 // pred_check
        %p121 = pneg %p77
      $region18: #{tpu_custom_call.1} parent=11 // pred_check_branch
        %123 = sbr.rel (%p121) target = $region20
      $region19: #{tpu_custom_call.1} parent=11 // pred_region
        _
      $region20: #{tpu_custom_call.1} parent=11 // pred_fallthru
        _
    $region12: #{tpu_custom_call.1} parent=5 // pred_fallthru
      _
    %p124 = scmp.lt.s32.totalorder %s9, 2
    // Predicated region
    $region21: #{tpu_custom_call.1} parent=5 // pred_check
      %p125 = pneg %p124
    $region22: #{tpu_custom_call.1} parent=5 // pred_check_branch
      %127 = sbr.rel (%p125) target = $region24
    $region23: #{tpu_custom_call.1} parent=5 // pred_region
      // Predicated region
      $region25: #{tpu_custom_call.1} parent=23 // pred_check
        %p128 = pneg %p29
      $region26: #{tpu_custom_call.1} parent=23 // pred_check_branch
        %130 = sbr.rel (%p128) target = $region28
      $region27: #{tpu_custom_call.1} parent=23 // pred_region
        %p131 = scmp.lt.s32.totalorder %s9, 1
        %s132 = scalar_select %p131, %s9, 1
        %s133 = smul.addr %s132, 2
        %s134 = smul.addr %s133, 4
        %s135 = scalar_lea.vmem %s0, %s134
      $region28: #{tpu_custom_call.1} parent=23 // pred_fallthru
        _
    $region24: #{tpu_custom_call.1} parent=5 // pred_fallthru
      _
    %p136 = scmp.le.s32.totalorder 1, %s9
    %p137 = scmp.lt.s32.totalorder %s9, 3
    %p138 = pnand %p136, %p137
    %p139 = pneg %p138
    // Predicated region
    $region29: #{tpu_custom_call.1} parent=5 // pred_check
      _
    $region30: #{tpu_custom_call.1} parent=5 // pred_check_branch
      %141 = sbr.rel (%p138) target = $region32
    $region31: #{tpu_custom_call.1} parent=5 // pred_region
      %s142 = ssub.s32 %s9, 1
      %p143 = scmp.lt.s32.totalorder %s14, 1
      %s144 = scalar_select %p143, %s14, 1
      %s145 = smul.addr %s144, 2
      %s146 = smul.addr %s145, 4
      %s147 = scalar_lea.vmem %s0, %s146
      %p148 = pneg %p35
      %p149 = pneg %p32
      %p150 = pneg %p56
      %p151 = pneg %p53
      %p152 = pneg %p77
      %p153 = pneg %p74
      %p154 = pneg %p103
      %p155 = pneg %p100
      %p156 = scmp.lt.s32.totalorder %s14, 1
      %s157 = scalar_select %p156, %s14, 1
      %s158 = smul.addr %s157, 2
      %s159 = smul.addr %s158, 8
      %s160 = scalar_lea.vmem %s3, %s159
      %p161 = scmp.lt.s32.totalorder %s14, 1
      %s162 = scalar_select %p161, %s14, 1
      %s163 = smul.addr %s162, 2
      %s164 = smul.addr %s163, 4
      %s165 = scalar_lea.vmem %s0, %s164
      %p166 = scmp.lt.s32.totalorder %s14, 1
      %s167 = scalar_select %p166, %s14, 1
      %s168 = smul.addr %s167, 2
      %s169 = smul.addr %s168, 8
      %s170 = scalar_lea.vmem %s3, %s169
      %v171 = vld [vmem:[%s165] sm:$0x77]
      %v173 = vcombine.high %v171, %v171
      %175 = vst [vmem:[#allocation2] sm:$0x7] %v171
      %176 = vst [vmem:[#allocation2 + $0x8] sm:$0x7] %v173
      %v177 = vrot.slane %v171, 5
      %v178 = vrot.slane %v173, 5
      %179 = vrot.lane.b32.xlu0 %v177, 127
      %v180 = vpop.permute.xlu0 %179
      %181 = vrot.lane.b32.xlu0 %v178, 127
      %v182 = vpop.permute.xlu0 %181
      %vm183 = vcmask 1039360
      %v184 = vsel %vm183, %v180, %v182
      %v185 = vsel %vm183, %v182, %v180
      %188 = vst [vmem:[#allocation2] sm:$0x38] %v184
      %189 = vst [vmem:[#allocation2 + $0x8] sm:$0x38] %v185
      %v190 = vrot.slane %v171, 2
      %v191 = vrot.slane %v173, 2
      %192 = vrot.lane.b32.xlu0 %v190, 126
      %v193 = vpop.permute.xlu0 %192
      %194 = vrot.lane.b32.xlu0 %v191, 126
      %v195 = vpop.permute.xlu0 %194
      %vm196 = vcmask 1031168
      %v197 = vsel %vm196, %v193, %v195
      %v198 = vsel %vm196, %v195, %v193
      %201 = vst [vmem:[#allocation2] sm:$0xc0] %v197
      %202 = vst [vmem:[#allocation2 + $0x8] sm:$0xc0] %v198
      %203 = vst [vmem:[#allocation2 + $0x10] sm:$0x1] %v197
      %204 = vst [vmem:[#allocation2 + $0x18] sm:$0x1] %v198
      %v205 = vrot.slane %v171, 7
      %v206 = vrot.slane %v173, 7
      %207 = vrot.lane.b32.xlu0 %v205, 112
      %v208 = vpop.permute.xlu0 %207
      %209 = vrot.lane.b32.xlu0 %v206, 112
      %v210 = vpop.permute.xlu0 %209
      %vm211 = vcmask 916480
      %v212 = vsel %vm211, %v208, %v210
      %v213 = vsel %vm211, %v210, %v208
      %216 = vst [vmem:[#allocation2 + $0x10] sm:$0xe] %v212
      %217 = vst [vmem:[#allocation2 + $0x18] sm:$0xe] %v213
      %v218 = vrot.slane %v171, 4
      %v219 = vrot.slane %v173, 4
      %220 = vrot.lane.b32.xlu0 %v218, 111
      %v221 = vpop.permute.xlu0 %220
      %222 = vrot.lane.b32.xlu0 %v219, 111
      %v223 = vpop.permute.xlu0 %222
      %vm224 = vcmask 908288
      %v225 = vsel %vm224, %v221, %v223
      %v226 = vsel %vm224, %v223, %v221
      %229 = vst [vmem:[#allocation2 + $0x10] sm:$0x70] %v225
      %230 = vst [vmem:[#allocation2 + $0x18] sm:$0x70] %v226
      %v231 = vrot.slane %v171, 1
      %v232 = vrot.slane %v173, 1
      %233 = vrot.lane.b32.xlu0 %v231, 110
      %v234 = vpop.permute.xlu0 %233
      %235 = vrot.lane.b32.xlu0 %v232, 110
      %v236 = vpop.permute.xlu0 %235
      %vm237 = vcmask 900096
      %v238 = vsel %vm237, %v234, %v236
      %v239 = vsel %vm237, %v236, %v234
      %242 = vst [vmem:[#allocation2 + $0x10] sm:$0x80] %v238
      %243 = vst [vmem:[#allocation2 + $0x18] sm:$0x80] %v239
      %244 = vst [vmem:[#allocation2 + $0x20] sm:$0x3] %v238
      %245 = vst [vmem:[#allocation2 + $0x28] sm:$0x3] %v239
      %v246 = vrot.slane %v171, 6
      %v247 = vrot.slane %v173, 6
      %248 = vrot.lane.b32.xlu0 %v246, 96
      %v249 = vpop.permute.xlu0 %248
      %250 = vrot.lane.b32.xlu0 %v247, 96
      %v251 = vpop.permute.xlu0 %250
      %vm252 = vcmask 785408
      %v253 = vsel %vm252, %v249, %v251
      %v254 = vsel %vm252, %v251, %v249
      %257 = vst [vmem:[#allocation2 + $0x20] sm:$0x1c] %v253
      %258 = vst [vmem:[#allocation2 + $0x28] sm:$0x1c] %v254
      %v259 = vrot.slane %v171, 3
      %v260 = vrot.slane %v173, 3
      %261 = vrot.lane.b32.xlu0 %v259, 95
      %v262 = vpop.permute.xlu0 %261
      %263 = vrot.lane.b32.xlu0 %v260, 95
      %v264 = vpop.permute.xlu0 %263
      %vm265 = vcmask 777216
      %v266 = vsel %vm265, %v262, %v264
      %v267 = vsel %vm265, %v264, %v262
      %270 = vst [vmem:[#allocation2 + $0x20] sm:$0xe0] %v266
      %271 = vst [vmem:[#allocation2 + $0x28] sm:$0xe0] %v267
      %272 = vrot.lane.b32.xlu0 %v171, 94
      %v273 = vpop.permute.xlu0 %272
      %274 = vrot.lane.b32.xlu0 %v173, 94
      %v275 = vpop.permute.xlu0 %274
      %vm276 = vcmask 769024
      %v277 = vsel %vm276, %v273, %v275
      %v278 = vsel %vm276, %v275, %v273
      %281 = vst [vmem:[#allocation2 + $0x30] sm:$0x7] %v277
      %282 = vst [vmem:[#allocation2 + $0x38] sm:$0x7] %v278
      %v283 = vld [vmem:[%s1] sm:$0x3f]
      %v284 = vld [vmem:[#allocation2] sm:$0xff]
      %v285 = vld [vmem:[#allocation2 + $0x8] sm:$0xff]
      %v286 = vld [vmem:[#allocation2 + $0x10] sm:$0xff]
      %v287 = vld [vmem:[#allocation2 + $0x18] sm:$0xff]
      %v288 = vld [vmem:[#allocation2 + $0x20] sm:$0xff]
      %v289 = vld [vmem:[#allocation2 + $0x28] sm:$0xff]
      %v290 = vld [vmem:[#allocation2 + $0x30] sm:$0x7]
      %v291 = vld [vmem:[#allocation2 + $0x38] sm:$0x7]
      %v292 = vld [vmem:[%s2] sm:$0x3f]
      %294 = vset.pattern.permute.xlu0 0
      %295 = vperm.xlu0 %294, %v292
      %v296 = vpop.permute.xlu0 %295
      %vm298 = vcmask 220160
      %v300 = vsel %vm298, %v283, 0
      %vm302 = vcmask 1042432
      %v304 = vsel %vm302, %v290, 0
      %v307 = vsel %vm302, %v291, 0
      %309 = vmatprep.subr.mxu0 %v285
      %310 = vmatpush1.msra.mxu0 %v284
      %311 = vmatprep.subr.mxu0 %v287
      %312 = vmatpush1.msra.mxu0 %v286
      %313 = vmatprep.subr.mxu0 %v289
      %314 = vmatpush1.msra.mxu0 %v288
      %315 = vmatprep.subr.mxu0 %v307
      %316 = vmatpush1.msra.mxu0 %v304
      %317 = vmatprep.subr.mxu0 0.0
      %318 = vmatpush1.msra.mxu0 0.0
      %319 = vmatprep.subr.mxu0 0.0
      %320 = vmatpush1.msra.mxu0 0.0
      %321 = vmatprep.subr.mxu0 0.0
      %322 = vmatpush1.msra.mxu0 0.0
      %323 = vmatprep.subr.mxu0 0.0
      %324 = vmatpush1.msra.mxu0 0.0
      %325 = vmatprep.subr.mxu0 0.0
      %326 = vmatpush1.msra.mxu0 0.0
      %327 = vmatprep.subr.mxu0 0.0
      %328 = vmatpush1.msra.mxu0 0.0
      %329 = vmatprep.subr.mxu0 0.0
      %330 = vmatpush1.msra.mxu0 0.0
      %331 = vmatprep.subr.mxu0 0.0
      %332 = vmatpush1.msra.mxu0 0.0
      %333 = vmatprep.subr.mxu0 0.0
      %334 = vmatpush1.msra.mxu0 0.0
      %335 = vmatprep.subr.mxu0 0.0
      %336 = vmatpush1.msra.mxu0 0.0
      %337 = vmatprep.subr.mxu0 0.0
      %338 = vmatpush1.msra.mxu0 0.0
      %339 = vmatprep.subr.mxu0 0.0
      %340 = vmatpush1.msra.mxu0 0.0
      %341 = vmatprep.subr.mxu0 0.0
      %342 = vmatpush1.msra.mxu0 0.0
      %343 = vmatprep.subr.mxu0 0.0
      %344 = vmatpush1.msra.mxu0 0.0
      %345 = vmatprep.subr.mxu0 0.0
      %346 = vmatpush1.msra.mxu0 0.0
      %347 = vmatprep.subr.mxu0 0.0
      %348 = vmatpush1.msra.mxu0 0.0
      %349 = vmatprep.subr.mxu0 0.0
      %350 = vmatpush1.msra.mxu0 0.0
      %351 = vmatprep.subr.mxu0 0.0
      %352 = vmatpush1.msra.mxu0 0.0
      %353 = vmatprep.subr.mxu0 0.0
      %354 = vmatpush1.msra.mxu0 0.0
      %355 = vmatprep.subr.mxu0 0.0
      %356 = vmatpush1.msra.mxu0 0.0
      %357 = vmatprep.subr.mxu0 0.0
      %358 = vmatpush1.msra.mxu0 0.0
      %359 = vmatprep.subr.mxu0 0.0
      %360 = vmatpush1.msra.mxu0 0.0
      %361 = vmatprep.subr.mxu0 0.0
      %362 = vmatpush1.msra.mxu0 0.0
      %363 = vmatprep.subr.mxu0 0.0
      %364 = vmatpush1.msra.mxu0 0.0
      %365 = vmatprep.subr.mxu0 0.0
      %366 = vmatpush1.msra.mxu0 0.0
      %367 = vmatprep.subr.mxu0 0.0
      %368 = vmatpush1.msra.mxu0 0.0
      %369 = vmatprep.subr.mxu0 0.0
      %370 = vmatpush1.msra.mxu0 0.0
      %371 = vmatprep.subr.mxu0 0.0
      %372 = vmatpush1.msra.mxu0 0.0
      %373 = vmatprep.mubr.f32.mxu0 0.0
      %374 = vmatmul.mubr.f32.gmra.mrb[0].mxu0 %v300
      %v375 = vpop.f32.mrb[0].mxu0
      %v376 = vadd.f32 %v296, %v375
      %v377 = vpop.f32.mrb[0].mxu0
      %v378 = vadd.f32 %v296, %v377
      %379 = vdwg.mxu0
      %380 = vst [vmem:[%s170] sm:$0x3f] %v376
      %381 = vst [vmem:[%s170 + $0x8] sm:$0x3f] %v378
      %p382 = scmp.lt.s32.totalorder %s14, 1
      %s383 = scalar_select %p382, %s14, 1
      %s384 = smul.addr %s383, 2
      %s385 = smul.addr %s384, 8
      %s386 = scalar_lea.vmem %s3, %s385
      // Predicated region
      $region33: #{tpu_custom_call.1} parent=31 // pred_check
        %p387 = pneg %p100
      $region34: #{tpu_custom_call.1} parent=31 // pred_check_branch
        %389 = sbr.rel (%p387) target = $region36
      $region35: #{tpu_custom_call.1} parent=31 // pred_region
        _
      $region36: #{tpu_custom_call.1} parent=31 // pred_fallthru
        _
    $region32: #{tpu_custom_call.1} parent=5 // pred_fallthru
      _
    %p390 = scmp.le.s32.totalorder 2, %s9
    // Predicated region
    $region37: #{tpu_custom_call.1} parent=5 // pred_check
      %p391 = pneg %p390
    $region38: #{tpu_custom_call.1} parent=5 // pred_check_branch
      %393 = sbr.rel (%p391) target = $region40
    $region39: #{tpu_custom_call.1} parent=5 // pred_region
      %s394 = ssub.s32 %s9, 2
      // Predicated region
      $region41: #{tpu_custom_call.1} parent=39 // pred_check
        %p395 = pneg %p106
      $region42: #{tpu_custom_call.1} parent=39 // pred_check_branch
        %397 = sbr.rel (%p395) target = $region44
      $region43: #{tpu_custom_call.1} parent=39 // pred_region
        %p398 = scmp.lt.s32.totalorder %s15, 1
        %s399 = scalar_select %p398, %s15, 1
        %s400 = smul.addr %s399, 2
        %s401 = smul.addr %s400, 8
        %s402 = scalar_lea.vmem %s3, %s401
      $region44: #{tpu_custom_call.1} parent=39 // pred_fallthru
        _
    $region40: #{tpu_custom_call.1} parent=5 // pred_fallthru
      _
  $region6: #{tpu_custom_call.1} parent=0 // loop_footer
    %s13 = sadd.s32 1, %s9
  $region7: #{tpu_custom_call.1} parent=0 // loop_footer_branch
    %8 = sbr.rel target = $region3
  $region8: #{tpu_custom_call.1} parent=0 // loop_exit
    _

</llo_original>
